<compile_context>
chip_gen: v5e
topology: v5e:2x2
jax: 0.10.0
libtpu: 0.0.40
codegen_flags: <defaults>
</compile_context>

<pallas_src>
import jax
import jax.numpy as jnp
from jax.experimental import pallas as pl
from jax.experimental.pallas import tpu as pltpu

LANE = 128
SUBLANE = 8


def _round_up(x, m):
    return ((x + m - 1) // m) * m


# ------------------------- Pallas kernel -------------------------

def _kgr_kernel(slots_ref, prio_ref, sym_dise_ref, w_out_ref, o_ref):
    """Fused: where-chain -> (TB,S)@(S,D) -> (TB,D)@(D,A_pad) -> dense store."""
    cs = slots_ref[...]                                     # (TB, S) f32
    prio = jnp.broadcast_to(prio_ref[...], cs.shape)        # (1, S) -> (TB, S)
    p = jnp.where(cs == 0.0, prio, cs)
    p = jnp.where(p == -2.0, prio, p)
    dise_prob = jnp.dot(p, sym_dise_ref[...],
                        preferred_element_type=jnp.float32,
                        precision=jax.lax.Precision.HIGHEST)        # (TB, D)
    o_ref[...] = jnp.dot(dise_prob, w_out_ref[...],
                         preferred_element_type=jnp.float32,
                         precision=jax.lax.Precision.HIGHEST)       # (TB, A_pad)


# ------------------------- Setup (done once) -------------------------

def make_kgr_buffers(sym_prio, sym_dise_mat, dise_sym_mat, *, dise_start,
                     num_actions):
    """Pre-shape constant buffers; fold the action-scatter into W_out."""
    dise_num, sym_num = dise_sym_mat.shape
    assert sym_dise_mat.shape == (sym_num, dise_num)
    sym_start = dise_start + dise_num
    assert num_actions == sym_start + sym_num, "action layout inconsistent"

    a_pad = _round_up(num_actions, LANE)                    # lane-dense output
    w_out = jnp.zeros((dise_num, a_pad), jnp.float32)
    w_out = w_out.at[:, dise_start:sym_start].set(
        jnp.eye(dise_num, dtype=jnp.float32))               # places dise_prob
    w_out = w_out.at[:, sym_start:num_actions].set(
        dise_sym_mat.astype(jnp.float32))                   # places sym_prob
    return {
        "sym_prio": jnp.asarray(sym_prio, jnp.float32).reshape(1, sym_num),
        "sym_dise_mat": jnp.asarray(sym_dise_mat, jnp.float32),
        "w_out": w_out,
    }


# ------------------------- Forward pass -------------------------

def kgr_forward(state, buffers, *, num_actions, dise_start, act_cardinality,
                slot_cardinality, dise_num):
    sym_num = slot_cardinality - dise_num - 1
    B = state.shape[0]
    start = 2 * act_cardinality + dise_num + 1
    # Static slice of the slot representation (cheap; avoids unaligned in-kernel
    # lane slicing of the full state).
    slots = state[:, start:start + sym_num].astype(jnp.float32)     # (B, S)

    a_pad = buffers["w_out"].shape[1]

    # Row tiling: one padded tile for small batches, 256-row parallel tiles
    # (megacore-splittable on v7x, VMEM-safe on all generations) for large ones.
    tb = 256 if B >= 256 else max(SUBLANE, _round_up(B, SUBLANE))
    b_pad = _round_up(B, tb)
    if b_pad != B:
        slots = jnp.pad(slots, ((0, b_pad - B), (0, 0)))

    out = pl.pallas_call(
        _kgr_kernel,
        out_shape=jax.ShapeDtypeStruct((b_pad, a_pad), jnp.float32),
        grid=(b_pad // tb,),
        in_specs=[
            pl.BlockSpec((tb, sym_num), lambda i: (i, 0)),          # slots
            pl.BlockSpec((1, sym_num), lambda i: (0, 0)),           # sym_prio
            pl.BlockSpec((sym_num, dise_num), lambda i: (0, 0)),    # sym_dise
            pl.BlockSpec((dise_num, a_pad), lambda i: (0, 0)),      # W_out
        ],
        out_specs=pl.BlockSpec((tb, a_pad), lambda i: (i, 0)),
        compiler_params=pltpu.CompilerParams(
            dimension_semantics=("parallel",)),
    )(slots, buffers["sym_prio"], buffers["sym_dise_mat"], buffers["w_out"])

    return out[:B, :num_actions]


# ------------------------- Pure-JAX reference (torch semantics) -------------------------

def kgr_reference(state, sym_prio, sym_dise_mat, dise_sym_mat, *, num_actions,
                  dise_start, act_cardinality, slot_cardinality, dise_num):
    B = state.shape[0]
    start = 2 * act_cardinality + dise_num + 1
    end = 2 * act_cardinality + slot_cardinality
    cs = state[:, start:end]
    prio = jnp.broadcast_to(sym_prio.reshape(1, -1), cs.shape)
    p = jnp.where(cs == 0, prio, cs)
    p = jnp.where(p == -2, prio, p)
    hp = jax.lax.Precision.HIGHEST
    dise_prob = jnp.dot(p, sym_dise_mat, precision=hp)
    sym_prob = jnp.dot(dise_prob, dise_sym_mat, precision=hp)
    sym_start = dise_start + dise_num
    action = jnp.zeros((B, num_actions), jnp.float32)
    action = action.at[:, dise_start:sym_start].set(dise_prob)
    action = action.at[:, sym_start:].set(sym_prob)
    return action


# ------------------------- Main -------------------------

if __name__ == "__main__":
    # Small, self-consistent knowledge-graph shapes.
    dise_num = 5                                        # diseases
    sym_num = 20                                        # symptoms
    dise_start = 3                                      # offset of disease actions
    num_actions = dise_start + dise_num + sym_num       # 28
    act_cardinality = num_actions                       # 28
    slot_cardinality = dise_num + 1 + sym_num           # 26
    state_dim = 2 * act_cardinality + slot_cardinality  # 82
    batch = 2

    key = jax.random.PRNGKey(0)
    k_state, k_codes, k_prio, k_sd, k_ds = jax.random.split(key, 5)

    state = jax.random.uniform(k_state, (batch, state_dim), jnp.float32)
    # Fill the slot region with exact {0, -2, 1, -1} codes so both `where`
    # branches of the forward are exercised.
    slot_lo = 2 * act_cardinality + dise_num + 1
    codes = jax.random.randint(k_codes, (batch, sym_num), 0, 4)
    slot_vals = jnp.where(codes == 0, 0.0,
                jnp.where(codes == 1, -2.0,
                jnp.where(codes == 2, 1.0, -1.0))).astype(jnp.float32)
    state = state.at[:, slot_lo:slot_lo + sym_num].set(slot_vals)

    sym_prio = jax.random.uniform(k_prio, (sym_num,), jnp.float32)
    sym_dise_mat = jax.random.uniform(k_sd, (sym_num, dise_num), jnp.float32)
    dise_sym_mat = jax.random.uniform(k_ds, (dise_num, sym_num), jnp.float32)

    buffers = make_kgr_buffers(sym_prio, sym_dise_mat, dise_sym_mat,
                               dise_start=dise_start, num_actions=num_actions)

    fwd = jax.jit(lambda s, b: kgr_forward(
        s, b, num_actions=num_actions, dise_start=dise_start,
        act_cardinality=act_cardinality, slot_cardinality=slot_cardinality,
        dise_num=dise_num))

    action = fwd(state, buffers)
    jax.block_until_ready(action)

    ref = kgr_reference(state, sym_prio, sym_dise_mat, dise_sym_mat,
                        num_actions=num_actions, dise_start=dise_start,
                        act_cardinality=act_cardinality,
                        slot_cardinality=slot_cardinality, dise_num=dise_num)

    assert action.shape == (batch, num_actions) and action.dtype == jnp.float32
    max_err = float(jnp.max(jnp.abs(action - ref)))
    assert max_err < 1e-3, f"mismatch vs reference: {max_err}"
    print("KERNEL_OK")
</pallas_src>

<mosaic_0001>
module attributes {stable_mosaic.version = 11 : i64} {
  func.func @_kgr_kernel(%arg0: i32, %arg1: memref<8x20xf32, #tpu.memory_space<vmem>>, %arg2: memref<1x20xf32, #tpu.memory_space<vmem>>, %arg3: memref<20x5xf32, #tpu.memory_space<vmem>>, %arg4: memref<5x128xf32, #tpu.memory_space<vmem>>, %arg5: memref<8x128xf32, #tpu.memory_space<vmem>>) attributes {dimension_semantics = [#tpu.dimension_semantics<parallel>], iteration_bounds = array<i64: 1>, scalar_prefetch = 0 : i64, scratch_operands = 0 : i64, tpu.core_type = #tpu.core_type<tc>, window_params = [{transform_indices = @transform_0, window_bounds = array<i64: 8, 20>}, {pipeline_mode = #tpu.pipeline_mode<synchronous>, transform_indices = @transform_1, window_bounds = array<i64: 1, 20>}, {pipeline_mode = #tpu.pipeline_mode<synchronous>, transform_indices = @transform_2, window_bounds = array<i64: 20, 5>}, {pipeline_mode = #tpu.pipeline_mode<synchronous>, transform_indices = @transform_3, window_bounds = array<i64: 5, 128>}, {transform_indices = @transform_4, window_bounds = array<i64: 8, 128>}]} {
    %c0 = arith.constant 0 : index
    %c0_0 = arith.constant 0 : index
    %0 = vector.load %arg1[%c0, %c0_0] : memref<8x20xf32, #tpu.memory_space<vmem>>, vector<8x20xf32>
    %c0_1 = arith.constant 0 : index
    %c0_2 = arith.constant 0 : index
    %1 = vector.load %arg2[%c0_1, %c0_2] : memref<1x20xf32, #tpu.memory_space<vmem>>, vector<1x20xf32>
    %2 = vector.shape_cast %1 : vector<1x20xf32> to vector<1x20xf32>
    %3 = vector.broadcast %2 : vector<1x20xf32> to vector<8x20xf32>
    %cst = arith.constant 0.000000e+00 : f32
    %4 = vector.broadcast %cst : f32 to vector<8x20xf32>
    %5 = arith.cmpf oeq, %0, %4 : vector<8x20xf32>
    %6 = arith.select %5, %3, %0 : vector<8x20xi1>, vector<8x20xf32>
    %cst_3 = arith.constant -2.000000e+00 : f32
    %7 = vector.broadcast %cst_3 : f32 to vector<8x20xf32>
    %8 = arith.cmpf oeq, %6, %7 : vector<8x20xf32>
    %9 = arith.select %8, %3, %6 : vector<8x20xi1>, vector<8x20xf32>
    %c0_4 = arith.constant 0 : index
    %c0_5 = arith.constant 0 : index
    %10 = vector.load %arg3[%c0_4, %c0_5] : memref<20x5xf32, #tpu.memory_space<vmem>>, vector<20x5xf32>
    %cst_6 = arith.constant dense<0.000000e+00> : vector<8x5xf32>
    %11 = tpu.matmul %9, %10, %cst_6 {dimension_numbers = #tpu.dot_dimension_numbers<[1], [0], [0], [1], [0, 0, 1, 1], [], []>, precision = #tpu.contract_precision<fp32>} : vector<8x20xf32>, vector<20x5xf32>, vector<8x5xf32> -> vector<8x5xf32>
    %c0_7 = arith.constant 0 : index
    %c0_8 = arith.constant 0 : index
    %12 = vector.load %arg4[%c0_7, %c0_8] : memref<5x128xf32, #tpu.memory_space<vmem>>, vector<5x128xf32>
    %cst_9 = arith.constant dense<0.000000e+00> : vector<8x128xf32>
    %13 = tpu.matmul %11, %12, %cst_9 {dimension_numbers = #tpu.dot_dimension_numbers<[1], [0], [0], [1], [0, 0, 1, 1], [], []>, precision = #tpu.contract_precision<fp32>} : vector<8x5xf32>, vector<5x128xf32>, vector<8x128xf32> -> vector<8x128xf32>
    %c0_10 = arith.constant 0 : index
    %c0_11 = arith.constant 0 : index
    %14 = vector.load %arg5[%c0_10, %c0_11] : memref<8x128xf32, #tpu.memory_space<vmem>>, vector<8x128xf32>
    tpu.vector_store %arg5[%c0_10, %c0_11], %13 {strides = array<i32>} : memref<8x128xf32, #tpu.memory_space<vmem>>, vector<8x128xf32>,
    return
  }
  func.func @transform_0(%arg0: i32) -> (i32, i32) {
    %c0_i32 = arith.constant 0 : i32
    %c0_i32_0 = arith.constant 0 : i32
    return %arg0, %c0_i32 : i32, i32
  }
  func.func @transform_1(%arg0: i32) -> (i32, i32) {
    %c0_i32 = arith.constant 0 : i32
    %c0_i32_0 = arith.constant 0 : i32
    %c0_i32_1 = arith.constant 0 : i32
    return %c0_i32, %c0_i32_0 : i32, i32
  }
  func.func @transform_2(%arg0: i32) -> (i32, i32) {
    %c0_i32 = arith.constant 0 : i32
    %c0_i32_0 = arith.constant 0 : i32
    %c0_i32_1 = arith.constant 0 : i32
    return %c0_i32, %c0_i32_0 : i32, i32
  }
  func.func @transform_3(%arg0: i32) -> (i32, i32) {
    %c0_i32 = arith.constant 0 : i32
    %c0_i32_0 = arith.constant 0 : i32
    %c0_i32_1 = arith.constant 0 : i32
    return %c0_i32, %c0_i32_0 : i32, i32
  }
  func.func @transform_4(%arg0: i32) -> (i32, i32) {
    %c0_i32 = arith.constant 0 : i32
    %c0_i32_0 = arith.constant 0 : i32
    return %arg0, %c0_i32 : i32, i32
  }
}

</mosaic_0001>

<llo_original>
// kernel: _lambda_.1
$region0: #{_lambda_.1}
  #allocation0 [shape = 'u32[]', space=smem, size = 0x4, offset = 0x4, fixed_abs, tag = 'smem constant byte address 0x4 - core index']
  #allocation1 [shape = 'u32[72,128]{1,0:T(1,128)}', space=vmem, size = 0x9000, scoped, tag = 'internal scratch']
  %s0 = inlined_call_operand.vmem [shape: f32[8,20], index: 0, kind: input, shape index: {}]
  %s1 = inlined_call_operand.vmem [shape: f32[1,20], index: 1, kind: input, shape index: {}]
  %s2 = inlined_call_operand.vmem [shape: f32[20,5], index: 2, kind: input, shape index: {}]
  %s3 = inlined_call_operand.vmem [shape: f32[5,128], index: 3, kind: input, shape index: {}]
  %s4 = inlined_call_operand.vmem [shape: f32[8,128], index: 4, kind: output, shape index: {}]
  %s5 = sld [smem:[#allocation0]]
  $region26: #{_lambda_.1} parent=0
    _
  %s7 = ssub.s32 1, %s5
  %s8 = scalar_select 0, %s7, %s5
  // Predicated region
  $region2: #{_lambda_.1} parent=0 // pred_check
    _
  $region3: #{_lambda_.1} parent=0 // pred_check_branch
    %10 = sbr.rel (0) target = $region5
  $region4: #{_lambda_.1} parent=0 // pred_region
    _
  $region5: #{_lambda_.1} parent=0 // pred_fallthru
    _
  // Predicated region
  $region6: #{_lambda_.1} parent=0 // pred_check
    _
  $region7: #{_lambda_.1} parent=0 // pred_check_branch
    %12 = sbr.rel (0) target = $region9
  $region8: #{_lambda_.1} parent=0 // pred_region
    _
  $region9: #{_lambda_.1} parent=0 // pred_fallthru
    _
  // Predicated region
  $region10: #{_lambda_.1} parent=0 // pred_check
    _
  $region11: #{_lambda_.1} parent=0 // pred_check_branch
    %14 = sbr.rel (0) target = $region13
  $region12: #{_lambda_.1} parent=0 // pred_region
    _
  $region13: #{_lambda_.1} parent=0 // pred_fallthru
    _
  // Predicated region
  $region14: #{_lambda_.1} parent=0 // pred_check
    _
  $region15: #{_lambda_.1} parent=0 // pred_check_branch
    %16 = sbr.rel (0) target = $region17
  $region16: #{_lambda_.1} parent=0 // pred_region
    _
  $region17: #{_lambda_.1} parent=0 // pred_fallthru
    _
  %v17 = vld [vmem:[%s0] sm:$0xff]
  %v18 = vld [vmem:[%s1] sm:$0x1]
  %v20 = vperm.slane %v18, 0
  %vm22 = vcmp.eq.f32.partialorder %v17, 0.0
  %v23 = vsel %vm22, %v20, %v17
  %vm24 = vcmp.eq.f32.partialorder %v23, -2.0
  %v25 = vsel %vm24, %v20, %v23
  %v26 = vld [vmem:[%s2] sm:$0xff]
  %v27 = vld [vmem:[%s2 + $0x8] sm:$0xff]
  %v28 = vld [vmem:[%s2 + $0x10] sm:$0xf]
  %vm29 = vcmask 162816
  %v31 = vsel %vm29, %v25, 0
  %vm33 = vcmask 1043456
  %v35 = vsel %vm33, %v28, 0
  %37 = vmatpush.msra.mxu0 0.0
  %38 = vmatpush.msra.mxu0 0.0
  %39 = vmatpush.msra.mxu0 0.0
  %40 = vmatpush.msra.mxu0 0.0
  %41 = vmatpush.msra.mxu0 0.0
  %42 = vmatpush.msra.mxu0 0.0
  %43 = vmatpush.msra.mxu0 0.0
  %44 = vmatpush.msra.mxu0 0.0
  %45 = vmatpush.msra.mxu0 0.0
  %46 = vmatpush.msra.mxu0 0.0
  %47 = vmatpush.msra.mxu0 0.0
  %48 = vmatpush.msra.mxu0 0.0
  %49 = vmatpush.msra.mxu0 0.0
  %v50 = vand.u32 %v35, 4294901760
  %51 = vmatpush.msra.mxu0 %v50
  %v52 = vand.u32 %v27, 4294901760
  %53 = vmatpush.msra.mxu0 %v52
  %v54 = vand.u32 %v26, 4294901760
  %55 = vmatpush.msra.mxu0 %v54
  %v56 = vand.u32 %v31, 4294901760
  %v57 = vsub.f32 %v31, %v56
  %v58 = vand.u32 %v57, 4294901760
  %v59 = vsub.f32 %v57, %v58
  %v60 = vand.u32 %v59, 4294901760
  %61 = vmatmul.f32.gmra.mxu0 %v60
  %v62 = vpop.f32.mrf.mxu0
  %v63 = vadd.f32 0.0, %v62
  %64 = vdwg.mxu0
  %65 = vmatpush.msra.mxu0 0.0
  %66 = vmatpush.msra.mxu0 0.0
  %67 = vmatpush.msra.mxu0 0.0
  %68 = vmatpush.msra.mxu0 0.0
  %69 = vmatpush.msra.mxu0 0.0
  %70 = vmatpush.msra.mxu0 0.0
  %71 = vmatpush.msra.mxu0 0.0
  %72 = vmatpush.msra.mxu0 0.0
  %73 = vmatpush.msra.mxu0 0.0
  %74 = vmatpush.msra.mxu0 0.0
  %75 = vmatpush.msra.mxu0 0.0
  %76 = vmatpush.msra.mxu0 0.0
  %77 = vmatpush.msra.mxu0 0.0
  %v78 = vand.u32 %v35, 4294901760
  %v79 = vsub.f32 %v35, %v78
  %v80 = vand.u32 %v79, 4294901760
  %v81 = vsub.f32 %v79, %v80
  %v82 = vand.u32 %v81, 4294901760
  %83 = vmatpush.msra.mxu0 %v82
  %v84 = vand.u32 %v27, 4294901760
  %v85 = vsub.f32 %v27, %v84
  %v86 = vand.u32 %v85, 4294901760
  %v87 = vsub.f32 %v85, %v86
  %v88 = vand.u32 %v87, 4294901760
  %89 = vmatpush.msra.mxu0 %v88
  %v90 = vand.u32 %v26, 4294901760
  %v91 = vsub.f32 %v26, %v90
  %v92 = vand.u32 %v91, 4294901760
  %v93 = vsub.f32 %v91, %v92
  %v94 = vand.u32 %v93, 4294901760
  %95 = vmatpush.msra.mxu0 %v94
  %v96 = vand.u32 %v31, 4294901760
  %97 = vmatmul.f32.gmra.mxu0 %v96
  %v98 = vpop.f32.mrf.mxu0
  %v99 = vadd.f32 %v63, %v98
  %100 = vdwg.mxu0
  %101 = vmatpush.msra.mxu0 0.0
  %102 = vmatpush.msra.mxu0 0.0
  %103 = vmatpush.msra.mxu0 0.0
  %104 = vmatpush.msra.mxu0 0.0
  %105 = vmatpush.msra.mxu0 0.0
  %106 = vmatpush.msra.mxu0 0.0
  %107 = vmatpush.msra.mxu0 0.0
  %108 = vmatpush.msra.mxu0 0.0
  %109 = vmatpush.msra.mxu0 0.0
  %110 = vmatpush.msra.mxu0 0.0
  %111 = vmatpush.msra.mxu0 0.0
  %112 = vmatpush.msra.mxu0 0.0
  %113 = vmatpush.msra.mxu0 0.0
  %v114 = vand.u32 %v35, 4294901760
  %v115 = vsub.f32 %v35, %v114
  %116 = vmatpush.msra.mxu0 %v115
  %v117 = vand.u32 %v27, 4294901760
  %v118 = vsub.f32 %v27, %v117
  %119 = vmatpush.msra.mxu0 %v118
  %v120 = vand.u32 %v26, 4294901760
  %v121 = vsub.f32 %v26, %v120
  %122 = vmatpush.msra.mxu0 %v121
  %v123 = vand.u32 %v31, 4294901760
  %v124 = vsub.f32 %v31, %v123
  %125 = vmatmul.f32.gmra.mxu0 %v124
  %v126 = vpop.f32.mrf.mxu0
  %v127 = vadd.f32 %v99, %v126
  %128 = vdwg.mxu0
  %129 = vmatpush.msra.mxu0 0.0
  %130 = vmatpush.msra.mxu0 0.0
  %131 = vmatpush.msra.mxu0 0.0
  %132 = vmatpush.msra.mxu0 0.0
  %133 = vmatpush.msra.mxu0 0.0
  %134 = vmatpush.msra.mxu0 0.0
  %135 = vmatpush.msra.mxu0 0.0
  %136 = vmatpush.msra.mxu0 0.0
  %137 = vmatpush.msra.mxu0 0.0
  %138 = vmatpush.msra.mxu0 0.0
  %139 = vmatpush.msra.mxu0 0.0
  %140 = vmatpush.msra.mxu0 0.0
  %141 = vmatpush.msra.mxu0 0.0
  %v142 = vand.u32 %v35, 4294901760
  %143 = vmatpush.msra.mxu0 %v142
  %v144 = vand.u32 %v27, 4294901760
  %145 = vmatpush.msra.mxu0 %v144
  %v146 = vand.u32 %v26, 4294901760
  %147 = vmatpush.msra.mxu0 %v146
  %v148 = vand.u32 %v31, 4294901760
  %v149 = vsub.f32 %v31, %v148
  %v150 = vand.u32 %v149, 4294901760
  %151 = vmatmul.f32.gmra.mxu0 %v150
  %v152 = vpop.f32.mrf.mxu0
  %v153 = vadd.f32 %v127, %v152
  %154 = vdwg.mxu0
  %155 = vmatpush.msra.mxu0 0.0
  %156 = vmatpush.msra.mxu0 0.0
  %157 = vmatpush.msra.mxu0 0.0
  %158 = vmatpush.msra.mxu0 0.0
  %159 = vmatpush.msra.mxu0 0.0
  %160 = vmatpush.msra.mxu0 0.0
  %161 = vmatpush.msra.mxu0 0.0
  %162 = vmatpush.msra.mxu0 0.0
  %163 = vmatpush.msra.mxu0 0.0
  %164 = vmatpush.msra.mxu0 0.0
  %165 = vmatpush.msra.mxu0 0.0
  %166 = vmatpush.msra.mxu0 0.0
  %167 = vmatpush.msra.mxu0 0.0
  %v168 = vand.u32 %v35, 4294901760
  %v169 = vsub.f32 %v35, %v168
  %v170 = vand.u32 %v169, 4294901760
  %171 = vmatpush.msra.mxu0 %v170
  %v172 = vand.u32 %v27, 4294901760
  %v173 = vsub.f32 %v27, %v172
  %v174 = vand.u32 %v173, 4294901760
  %175 = vmatpush.msra.mxu0 %v174
  %v176 = vand.u32 %v26, 4294901760
  %v177 = vsub.f32 %v26, %v176
  %v178 = vand.u32 %v177, 4294901760
  %179 = vmatpush.msra.mxu0 %v178
  %v180 = vand.u32 %v31, 4294901760
  %181 = vmatmul.f32.gmra.mxu0 %v180
  %v182 = vpop.f32.mrf.mxu0
  %v183 = vadd.f32 %v153, %v182
  %184 = vdwg.mxu0
  %185 = vmatpush.msra.mxu0 0.0
  %186 = vmatpush.msra.mxu0 0.0
  %187 = vmatpush.msra.mxu0 0.0
  %188 = vmatpush.msra.mxu0 0.0
  %189 = vmatpush.msra.mxu0 0.0
  %190 = vmatpush.msra.mxu0 0.0
  %191 = vmatpush.msra.mxu0 0.0
  %192 = vmatpush.msra.mxu0 0.0
  %193 = vmatpush.msra.mxu0 0.0
  %194 = vmatpush.msra.mxu0 0.0
  %195 = vmatpush.msra.mxu0 0.0
  %196 = vmatpush.msra.mxu0 0.0
  %197 = vmatpush.msra.mxu0 0.0
  %v198 = vand.u32 %v35, 4294901760
  %199 = vmatpush.msra.mxu0 %v198
  %v200 = vand.u32 %v27, 4294901760
  %201 = vmatpush.msra.mxu0 %v200
  %v202 = vand.u32 %v26, 4294901760
  %203 = vmatpush.msra.mxu0 %v202
  %v204 = vand.u32 %v31, 4294901760
  %205 = vmatmul.f32.gmra.mxu0 %v204
  %v206 = vpop.f32.mrf.mxu0
  %v207 = vadd.f32 %v183, %v206
  %208 = vdwg.mxu0
  %v209 = vld [vmem:[%s3] sm:$0x1f]
  %vm210 = vcmask 39936
  %v212 = vsel %vm210, %v207, 0
  %vm214 = vcmask 1044480
  %v216 = vsel %vm214, %v209, 0
  %218 = vmatpush.msra.mxu0 0.0
  %219 = vmatpush.msra.mxu0 0.0
  %220 = vmatpush.msra.mxu0 0.0
  %221 = vmatpush.msra.mxu0 0.0
  %222 = vmatpush.msra.mxu0 0.0
  %223 = vmatpush.msra.mxu0 0.0
  %224 = vmatpush.msra.mxu0 0.0
  %225 = vmatpush.msra.mxu0 0.0
  %226 = vmatpush.msra.mxu0 0.0
  %227 = vmatpush.msra.mxu0 0.0
  %228 = vmatpush.msra.mxu0 0.0
  %229 = vmatpush.msra.mxu0 0.0
  %230 = vmatpush.msra.mxu0 0.0
  %231 = vmatpush.msra.mxu0 0.0
  %232 = vmatpush.msra.mxu0 0.0
  %v233 = vand.u32 %v216, 4294901760
  %234 = vmatpush.msra.mxu0 %v233
  %v235 = vand.u32 %v212, 4294901760
  %v236 = vsub.f32 %v212, %v235
  %v237 = vand.u32 %v236, 4294901760
  %v238 = vsub.f32 %v236, %v237
  %v239 = vand.u32 %v238, 4294901760
  %240 = vmatmul.f32.gmra.mxu0 %v239
  %v241 = vpop.f32.mrf.mxu0
  %v242 = vadd.f32 0.0, %v241
  %243 = vdwg.mxu0
  %244 = vmatpush.msra.mxu0 0.0
  %245 = vmatpush.msra.mxu0 0.0
  %246 = vmatpush.msra.mxu0 0.0
  %247 = vmatpush.msra.mxu0 0.0
  %248 = vmatpush.msra.mxu0 0.0
  %249 = vmatpush.msra.mxu0 0.0
  %250 = vmatpush.msra.mxu0 0.0
  %251 = vmatpush.msra.mxu0 0.0
  %252 = vmatpush.msra.mxu0 0.0
  %253 = vmatpush.msra.mxu0 0.0
  %254 = vmatpush.msra.mxu0 0.0
  %255 = vmatpush.msra.mxu0 0.0
  %256 = vmatpush.msra.mxu0 0.0
  %257 = vmatpush.msra.mxu0 0.0
  %258 = vmatpush.msra.mxu0 0.0
  %v259 = vand.u32 %v216, 4294901760
  %v260 = vsub.f32 %v216, %v259
  %v261 = vand.u32 %v260, 4294901760
  %v262 = vsub.f32 %v260, %v261
  %v263 = vand.u32 %v262, 4294901760
  %264 = vmatpush.msra.mxu0 %v263
  %v265 = vand.u32 %v212, 4294901760
  %266 = vmatmul.f32.gmra.mxu0 %v265
  %v267 = vpop.f32.mrf.mxu0
  %v268 = vadd.f32 %v242, %v267
  %269 = vdwg.mxu0
  %270 = vmatpush.msra.mxu0 0.0
  %271 = vmatpush.msra.mxu0 0.0
  %272 = vmatpush.msra.mxu0 0.0
  %273 = vmatpush.msra.mxu0 0.0
  %274 = vmatpush.msra.mxu0 0.0
  %275 = vmatpush.msra.mxu0 0.0
  %276 = vmatpush.msra.mxu0 0.0
  %277 = vmatpush.msra.mxu0 0.0
  %278 = vmatpush.msra.mxu0 0.0
  %279 = vmatpush.msra.mxu0 0.0
  %280 = vmatpush.msra.mxu0 0.0
  %281 = vmatpush.msra.mxu0 0.0
  %282 = vmatpush.msra.mxu0 0.0
  %283 = vmatpush.msra.mxu0 0.0
  %284 = vmatpush.msra.mxu0 0.0
  %v285 = vand.u32 %v216, 4294901760
  %v286 = vsub.f32 %v216, %v285
  %287 = vmatpush.msra.mxu0 %v286
  %v288 = vand.u32 %v212, 4294901760
  %v289 = vsub.f32 %v212, %v288
  %290 = vmatmul.f32.gmra.mxu0 %v289
  %v291 = vpop.f32.mrf.mxu0
  %v292 = vadd.f32 %v268, %v291
  %293 = vdwg.mxu0
  %294 = vmatpush.msra.mxu0 0.0
  %295 = vmatpush.msra.mxu0 0.0
  %296 = vmatpush.msra.mxu0 0.0
  %297 = vmatpush.msra.mxu0 0.0
  %298 = vmatpush.msra.mxu0 0.0
  %299 = vmatpush.msra.mxu0 0.0
  %300 = vmatpush.msra.mxu0 0.0
  %301 = vmatpush.msra.mxu0 0.0
  %302 = vmatpush.msra.mxu0 0.0
  %303 = vmatpush.msra.mxu0 0.0
  %304 = vmatpush.msra.mxu0 0.0
  %305 = vmatpush.msra.mxu0 0.0
  %306 = vmatpush.msra.mxu0 0.0
  %307 = vmatpush.msra.mxu0 0.0
  %308 = vmatpush.msra.mxu0 0.0
  %v309 = vand.u32 %v216, 4294901760
  %310 = vmatpush.msra.mxu0 %v309
  %v311 = vand.u32 %v212, 4294901760
  %v312 = vsub.f32 %v212, %v311
  %v313 = vand.u32 %v312, 4294901760
  %314 = vmatmul.f32.gmra.mxu0 %v313
  %v315 = vpop.f32.mrf.mxu0
  %v316 = vadd.f32 %v292, %v315
  %317 = vdwg.mxu0
  %318 = vmatpush.msra.mxu0 0.0
  %319 = vmatpush.msra.mxu0 0.0
  %320 = vmatpush.msra.mxu0 0.0
  %321 = vmatpush.msra.mxu0 0.0
  %322 = vmatpush.msra.mxu0 0.0
  %323 = vmatpush.msra.mxu0 0.0
  %324 = vmatpush.msra.mxu0 0.0
  %325 = vmatpush.msra.mxu0 0.0
  %326 = vmatpush.msra.mxu0 0.0
  %327 = vmatpush.msra.mxu0 0.0
  %328 = vmatpush.msra.mxu0 0.0
  %329 = vmatpush.msra.mxu0 0.0
  %330 = vmatpush.msra.mxu0 0.0
  %331 = vmatpush.msra.mxu0 0.0
  %332 = vmatpush.msra.mxu0 0.0
  %v333 = vand.u32 %v216, 4294901760
  %v334 = vsub.f32 %v216, %v333
  %v335 = vand.u32 %v334, 4294901760
  %336 = vmatpush.msra.mxu0 %v335
  %v337 = vand.u32 %v212, 4294901760
  %338 = vmatmul.f32.gmra.mxu0 %v337
  %v339 = vpop.f32.mrf.mxu0
  %v340 = vadd.f32 %v316, %v339
  %341 = vdwg.mxu0
  %342 = vmatpush.msra.mxu0 0.0
  %343 = vmatpush.msra.mxu0 0.0
  %344 = vmatpush.msra.mxu0 0.0
  %345 = vmatpush.msra.mxu0 0.0
  %346 = vmatpush.msra.mxu0 0.0
  %347 = vmatpush.msra.mxu0 0.0
  %348 = vmatpush.msra.mxu0 0.0
  %349 = vmatpush.msra.mxu0 0.0
  %350 = vmatpush.msra.mxu0 0.0
  %351 = vmatpush.msra.mxu0 0.0
  %352 = vmatpush.msra.mxu0 0.0
  %353 = vmatpush.msra.mxu0 0.0
  %354 = vmatpush.msra.mxu0 0.0
  %355 = vmatpush.msra.mxu0 0.0
  %356 = vmatpush.msra.mxu0 0.0
  %v357 = vand.u32 %v216, 4294901760
  %358 = vmatpush.msra.mxu0 %v357
  %v359 = vand.u32 %v212, 4294901760
  %360 = vmatmul.f32.gmra.mxu0 %v359
  %v361 = vpop.f32.mrf.mxu0
  %v362 = vadd.f32 %v340, %v361
  %363 = vdwg.mxu0
  %364 = vst [vmem:[%s4] sm:$0xff] %v362
  // Predicated region
  $region18: #{_lambda_.1} parent=0 // pred_check
    _
  $region19: #{_lambda_.1} parent=0 // pred_check_branch
    %366 = sbr.rel (0) target = $region21
  $region20: #{_lambda_.1} parent=0 // pred_region
    _
  $region21: #{_lambda_.1} parent=0 // pred_fallthru
    _
  // Predicated region
  $region22: #{_lambda_.1} parent=0 // pred_check
    _
  $region23: #{_lambda_.1} parent=0 // pred_check_branch
    %368 = sbr.rel (0) target = $region25
  $region24: #{_lambda_.1} parent=0 // pred_region
    _
  $region25: #{_lambda_.1} parent=0 // pred_fallthru
    _

</llo_original>
